<compile_context>
chip_gen: v6e
topology: v6e:2x2x1
jax: 0.10.0
libtpu: 0.0.40
codegen_flags: <defaults>
</compile_context>

<pallas_src>
import numpy as np

import jax
import jax.numpy as jnp
from jax.experimental import pallas as pl
from jax.experimental.pallas import tpu as pltpu


def _round_up(x, m):
    return ((x + m - 1) // m) * m


# ---------------------------------------------------------------------------
# Kernels
# ---------------------------------------------------------------------------
def _linear_kernel_fused(x_ref, w_ref, b_ref, o_ref):
    """Whole-K kernel: out = x @ w + b in one MXU pass (no reduction axis)."""
    acc = jnp.dot(x_ref[...], w_ref[...], preferred_element_type=jnp.float32)
    acc = acc + b_ref[...].astype(jnp.float32)      # (1, tn) sublane-broadcast
    o_ref[...] = acc.astype(o_ref.dtype)


def _linear_kernel_ksplit(x_ref, w_ref, b_ref, o_ref, acc_ref):
    """K-tiled kernel: f32 accumulator seeded with the bias at k == 0."""
    k = pl.program_id(2)

    @pl.when(k == 0)
    def _init():
        acc_ref[...] = jnp.broadcast_to(
            b_ref[...].astype(jnp.float32), acc_ref.shape
        )

    acc_ref[...] += jnp.dot(
        x_ref[...], w_ref[...], preferred_element_type=jnp.float32
    )

    @pl.when(k == pl.num_programs(2) - 1)
    def _finalize():
        o_ref[...] = acc_ref[...].astype(o_ref.dtype)


# ---------------------------------------------------------------------------
# Wrapper
# ---------------------------------------------------------------------------
def _pick_tiles(M, K, N):
    # Sublane-aligned M tile, lane-aligned N/K tiles.  Small shapes collapse
    # to a single (padded) tile; large shapes get MXU/HBM-friendly slabs.
    tm = min(256, _round_up(M, 8))
    tk = min(512, _round_up(K, 128))
    tn = min(512, _round_up(N, 128))
    return tm, tk, tn


@jax.jit
def linear_forward(x, w, b):
    """Pallas equivalent of LinearFunctional.forward: x @ w + b."""
    orig_shape = x.shape
    x2 = x.reshape(1, -1) if x.ndim == 1 else x.reshape(-1, x.shape[-1])
    M, K = x2.shape
    Kw, N = w.shape
    assert K == Kw, (K, Kw)
    b2 = b.reshape(1, N)
    out_dtype = x.dtype

    tm, tk, tn = _pick_tiles(M, K, N)
    Mp, Kp, Np = _round_up(M, tm), _round_up(K, tk), _round_up(N, tn)

    # Zero-pad up to tile multiples (correct for matmul; sliced away below).
    xp = x2 if (Mp == M and Kp == K) else jnp.pad(x2, ((0, Mp - M), (0, Kp - K)))
    wp = w if (Kp == K and Np == N) else jnp.pad(w, ((0, Kp - K), (0, Np - N)))
    bp = b2 if Np == N else jnp.pad(b2, ((0, 0), (0, Np - N)))

    itemsize = jnp.dtype(x.dtype).itemsize
    cost = pl.CostEstimate(
        flops=2 * M * K * N,
        transcendentals=0,
        bytes_accessed=(
            M * K * itemsize
            + K * N * jnp.dtype(w.dtype).itemsize
            + N * jnp.dtype(b.dtype).itemsize
            + M * N * itemsize
        ),
    )

    nk = Kp // tk
    if nk == 1:
        # K fits in one tile: fused kernel, 2-D parallel grid, no scratch.
        out = pl.pallas_call(
            _linear_kernel_fused,
            out_shape=jax.ShapeDtypeStruct((Mp, Np), out_dtype),
            grid_spec=pltpu.PrefetchScalarGridSpec(
                num_scalar_prefetch=0,
                grid=(Mp // tm, Np // tn),
                in_specs=[
                    pl.BlockSpec((tm, Kp), lambda i, j: (i, 0)),   # x slab
                    pl.BlockSpec((Kp, tn), lambda i, j: (0, j)),   # W slab
                    pl.BlockSpec((1, tn), lambda i, j: (0, j)),    # bias tile
                ],
                out_specs=pl.BlockSpec((tm, tn), lambda i, j: (i, j)),
            ),
            compiler_params=pltpu.CompilerParams(
                dimension_semantics=("parallel", "parallel"),
                vmem_limit_bytes=32 * 1024 * 1024,
            ),
            cost_estimate=cost,
        )(xp, wp, bp)
    else:
        # K split across grid axis 2: accumulate in f32 VMEM scratch.
        out = pl.pallas_call(
            _linear_kernel_ksplit,
            out_shape=jax.ShapeDtypeStruct((Mp, Np), out_dtype),
            grid_spec=pltpu.PrefetchScalarGridSpec(
                num_scalar_prefetch=0,
                grid=(Mp // tm, Np // tn, nk),
                in_specs=[
                    pl.BlockSpec((tm, tk), lambda i, j, k: (i, k)),  # x tile
                    pl.BlockSpec((tk, tn), lambda i, j, k: (k, j)),  # W tile
                    pl.BlockSpec((1, tn), lambda i, j, k: (0, j)),   # bias tile
                ],
                out_specs=pl.BlockSpec((tm, tn), lambda i, j, k: (i, j)),
                scratch_shapes=[pltpu.VMEM((tm, tn), jnp.float32)],
            ),
            compiler_params=pltpu.CompilerParams(
                dimension_semantics=("parallel", "parallel", "arbitrary"),
                vmem_limit_bytes=32 * 1024 * 1024,
            ),
            cost_estimate=cost,
        )(xp, wp, bp)

    out = out[:M, :N]
    return out.reshape(orig_shape[:-1] + (N,))


def init_linear_params(key, dim_in, dim_out, dtype=jnp.float32):
    # Matches the torch module exactly:
    #   nn.init.uniform_(w, a=-1/dim_out, b=1/dim_out)
    #   nn.init.uniform_(b, -1/dim_out)   # torch default upper bound = 1.0
    kw, kb = jax.random.split(key)
    bound = 1.0 / dim_out
    w = jax.random.uniform(kw, (dim_in, dim_out), dtype, minval=-bound, maxval=bound)
    b = jax.random.uniform(kb, (dim_out,), dtype, minval=-bound, maxval=1.0)
    return w, b


if __name__ == "__main__":
    key = jax.random.PRNGKey(0)
    k1, k2, k3, k4, k5, k6 = jax.random.split(key, 6)

    # --- Case 1: exactly the reference script — 1-D input, Linear(5, 5) ----
    dim = 5
    w1, b1 = init_linear_params(k1, dim, dim)
    x1 = jax.random.normal(k2, (dim,), dtype=jnp.float32)
    out1 = jax.block_until_ready(linear_forward(x1, w1, b1))
    ref1 = x1 @ w1 + b1
    assert out1.shape == (dim,)
    assert jnp.allclose(out1, ref1, atol=1e-5, rtol=1e-5)

    # --- Case 2: small batched input, Linear(32, 32) ------------------------
    w2, b2 = init_linear_params(k3, 32, 32)
    x2 = jax.random.normal(k4, (8, 32), dtype=jnp.float32)
    out2 = jax.block_until_ready(linear_forward(x2, w2, b2))
    ref2 = x2 @ w2 + b2
    assert out2.shape == (8, 32)
    assert jnp.allclose(out2, ref2, atol=1e-5, rtol=1e-5)

    # --- Case 3: exercises the K-split (3-D grid, accumulator) path ---------
    M, K, N = 64, 1536, 256
    w3, b3 = init_linear_params(k5, K, N)
    x3 = jax.random.normal(k6, (M, K), dtype=jnp.float32)
    out3 = jax.block_until_ready(linear_forward(x3, w3, b3))
    ref3 = (np.asarray(x3, np.float64) @ np.asarray(w3, np.float64)
            + np.asarray(b3, np.float64))
    assert out3.shape == (M, N)
    assert np.allclose(np.asarray(out3, np.float64), ref3, atol=2e-3, rtol=2e-2)

    print("KERNEL_OK")
</pallas_src>

<mosaic_0001>
module attributes {stable_mosaic.version = 11 : i64} {
  func.func @_linear_kernel_fused(%arg0: i32, %arg1: i32, %arg2: memref<8x128xf32, #tpu.memory_space<vmem>>, %arg3: memref<128x128xf32, #tpu.memory_space<vmem>>, %arg4: memref<1x128xf32, #tpu.memory_space<vmem>>, %arg5: memref<8x128xf32, #tpu.memory_space<vmem>>) attributes {dimension_semantics = [#tpu.dimension_semantics<parallel>, #tpu.dimension_semantics<parallel>], iteration_bounds = array<i64: 1, 1>, scalar_prefetch = 0 : i64, scratch_operands = 0 : i64, tpu.core_type = #tpu.core_type<tc>, window_params = [{transform_indices = @transform_0, window_bounds = array<i64: 8, 128>}, {transform_indices = @transform_1, window_bounds = array<i64: 128, 128>}, {transform_indices = @transform_2, window_bounds = array<i64: 1, 128>}, {transform_indices = @transform_3, window_bounds = array<i64: 8, 128>}]} {
    %c0 = arith.constant 0 : index
    %c0_0 = arith.constant 0 : index
    %0 = vector.load %arg2[%c0, %c0_0] : memref<8x128xf32, #tpu.memory_space<vmem>>, vector<8x128xf32>
    %c0_1 = arith.constant 0 : index
    %c0_2 = arith.constant 0 : index
    %1 = vector.load %arg3[%c0_1, %c0_2] : memref<128x128xf32, #tpu.memory_space<vmem>>, vector<128x128xf32>
    %cst = arith.constant dense<0.000000e+00> : vector<8x128xf32>
    %2 = tpu.matmul %0, %1, %cst {dimension_numbers = #tpu.dot_dimension_numbers<[1], [0], [0], [1], [0, 0, 1, 1], [], []>} : vector<8x128xf32>, vector<128x128xf32>, vector<8x128xf32> -> vector<8x128xf32>
    %c0_3 = arith.constant 0 : index
    %c0_4 = arith.constant 0 : index
    %3 = vector.load %arg4[%c0_3, %c0_4] : memref<1x128xf32, #tpu.memory_space<vmem>>, vector<1x128xf32>
    %4 = vector.broadcast %3 : vector<1x128xf32> to vector<8x128xf32>
    %5 = arith.addf %2, %4 : vector<8x128xf32>
    %c0_5 = arith.constant 0 : index
    %c0_6 = arith.constant 0 : index
    %6 = vector.load %arg5[%c0_5, %c0_6] : memref<8x128xf32, #tpu.memory_space<vmem>>, vector<8x128xf32>
    tpu.vector_store %arg5[%c0_5, %c0_6], %5 {strides = array<i32>} : memref<8x128xf32, #tpu.memory_space<vmem>>, vector<8x128xf32>,
    return
  }
  func.func @transform_0(%arg0: i32, %arg1: i32) -> (i32, i32) {
    %c0_i32 = arith.constant 0 : i32
    %c0_i32_0 = arith.constant 0 : i32
    return %arg0, %c0_i32 : i32, i32
  }
  func.func @transform_1(%arg0: i32, %arg1: i32) -> (i32, i32) {
    %c0_i32 = arith.constant 0 : i32
    %c0_i32_0 = arith.constant 0 : i32
    return %c0_i32, %arg1 : i32, i32
  }
  func.func @transform_2(%arg0: i32, %arg1: i32) -> (i32, i32) {
    %c0_i32 = arith.constant 0 : i32
    %c0_i32_0 = arith.constant 0 : i32
    return %c0_i32, %arg1 : i32, i32
  }
  func.func @transform_3(%arg0: i32, %arg1: i32) -> (i32, i32) {
    %c0_i32 = arith.constant 0 : i32
    return %arg0, %arg1 : i32, i32
  }
}

</mosaic_0001>

<llo_original>
// kernel: linear_forward.1
$region0: #{linear_forward.1}
  #allocation0 [shape = 'u32[]', space=smem, size = 0x4, offset = 0x4, fixed_abs, tag = 'smem constant byte address 0x4 - core index']
  #allocation1 [shape = 'u32[144,128]{1,0:T(1,128)}', space=vmem, size = 0x12000, scoped, tag = 'internal scratch']
  %s0 = inlined_call_operand.vmem [shape: f32[8,128], index: 0, kind: input, shape index: {}]
  %s1 = inlined_call_operand.vmem [shape: f32[128,128], index: 1, kind: input, shape index: {}]
  %s2 = inlined_call_operand.vmem [shape: f32[1,128], index: 2, kind: input, shape index: {}]
  %s3 = inlined_call_operand.vmem [shape: f32[8,128], index: 3, kind: output, shape index: {}]
  %s4 = sld [smem:[#allocation0]]
  $region22: #{linear_forward.1} parent=0
    _
  %s6 = ssub.s32 1, %s4
  %s7 = scalar_select 0, %s6, %s4
  // Predicated region
  $region2: #{linear_forward.1} parent=0 // pred_check
    _
  $region3: #{linear_forward.1} parent=0 // pred_check_branch
    %9 = sbr.rel (0) target = $region5
  $region4: #{linear_forward.1} parent=0 // pred_region
    _
  $region5: #{linear_forward.1} parent=0 // pred_fallthru
    _
  // Predicated region
  $region6: #{linear_forward.1} parent=0 // pred_check
    _
  $region7: #{linear_forward.1} parent=0 // pred_check_branch
    %11 = sbr.rel (0) target = $region9
  $region8: #{linear_forward.1} parent=0 // pred_region
    _
  $region9: #{linear_forward.1} parent=0 // pred_fallthru
    _
  // Predicated region
  $region10: #{linear_forward.1} parent=0 // pred_check
    _
  $region11: #{linear_forward.1} parent=0 // pred_check_branch
    %13 = sbr.rel (0) target = $region13
  $region12: #{linear_forward.1} parent=0 // pred_region
    _
  $region13: #{linear_forward.1} parent=0 // pred_fallthru
    _
  %v14 = vld [vmem:[%s0] sm:$0xff]
  %v15 = vld [vmem:[%s1] sm:$0xff]
  %v16 = vld [vmem:[%s1 + $0x8] sm:$0xff]
  %v17 = vld [vmem:[%s1 + $0x10] sm:$0xff]
  %v18 = vld [vmem:[%s1 + $0x18] sm:$0xff]
  %v19 = vld [vmem:[%s1 + $0x20] sm:$0xff]
  %v20 = vld [vmem:[%s1 + $0x28] sm:$0xff]
  %v21 = vld [vmem:[%s1 + $0x30] sm:$0xff]
  %v22 = vld [vmem:[%s1 + $0x38] sm:$0xff]
  %v23 = vld [vmem:[%s1 + $0x40] sm:$0xff]
  %v24 = vld [vmem:[%s1 + $0x48] sm:$0xff]
  %v25 = vld [vmem:[%s1 + $0x50] sm:$0xff]
  %v26 = vld [vmem:[%s1 + $0x58] sm:$0xff]
  %v27 = vld [vmem:[%s1 + $0x60] sm:$0xff]
  %v28 = vld [vmem:[%s1 + $0x68] sm:$0xff]
  %v29 = vld [vmem:[%s1 + $0x70] sm:$0xff]
  %v30 = vld [vmem:[%s1 + $0x78] sm:$0xff]
  %v31 = vld [vmem:[%s2] sm:$0x1]
  %v33 = vlaneseq
  %v34 = vshrl.u32 %v33, 7
  %v35 = vsub.s32 0, %v34
  %v36 = vrot.slane %v31, %v35
  %38 = vmatprep.subr.mxu0 0.0
  %39 = vmatpush1.msra.mxu0 %v30
  %40 = vmatprep.subr.mxu0 0.0
  %41 = vmatpush1.msra.mxu0 %v29
  %42 = vmatprep.subr.mxu0 0.0
  %43 = vmatpush1.msra.mxu0 %v28
  %44 = vmatprep.subr.mxu0 0.0
  %45 = vmatpush1.msra.mxu0 %v27
  %46 = vmatprep.subr.mxu0 0.0
  %47 = vmatpush1.msra.mxu0 %v26
  %48 = vmatprep.subr.mxu0 0.0
  %49 = vmatpush1.msra.mxu0 %v25
  %50 = vmatprep.subr.mxu0 0.0
  %51 = vmatpush1.msra.mxu0 %v24
  %52 = vmatprep.subr.mxu0 0.0
  %53 = vmatpush1.msra.mxu0 %v23
  %54 = vmatprep.subr.mxu0 0.0
  %55 = vmatpush1.msra.mxu0 %v22
  %56 = vmatprep.subr.mxu0 0.0
  %57 = vmatpush1.msra.mxu0 %v21
  %58 = vmatprep.subr.mxu0 0.0
  %59 = vmatpush1.msra.mxu0 %v20
  %60 = vmatprep.subr.mxu0 0.0
  %61 = vmatpush1.msra.mxu0 %v19
  %62 = vmatprep.subr.mxu0 0.0
  %63 = vmatpush1.msra.mxu0 %v18
  %64 = vmatprep.subr.mxu0 0.0
  %65 = vmatpush1.msra.mxu0 %v17
  %66 = vmatprep.subr.mxu0 0.0
  %67 = vmatpush1.msra.mxu0 %v16
  %68 = vmatprep.subr.mxu0 0.0
  %69 = vmatpush1.msra.mxu0 %v15
  %70 = vmatprep.subr.mxu0 0.0
  %71 = vmatpush2.msra.mxu0 0.0
  %72 = vmatprep.subr.mxu0 0.0
  %73 = vmatpush2.msra.mxu0 0.0
  %74 = vmatprep.subr.mxu0 0.0
  %75 = vmatpush2.msra.mxu0 0.0
  %76 = vmatprep.subr.mxu0 0.0
  %77 = vmatpush2.msra.mxu0 0.0
  %78 = vmatprep.subr.mxu0 0.0
  %79 = vmatpush2.msra.mxu0 0.0
  %80 = vmatprep.subr.mxu0 0.0
  %81 = vmatpush2.msra.mxu0 0.0
  %82 = vmatprep.subr.mxu0 0.0
  %83 = vmatpush2.msra.mxu0 0.0
  %84 = vmatprep.subr.mxu0 0.0
  %85 = vmatpush2.msra.mxu0 0.0
  %86 = vmatprep.subr.mxu0 0.0
  %87 = vmatpush2.msra.mxu0 0.0
  %88 = vmatprep.subr.mxu0 0.0
  %89 = vmatpush2.msra.mxu0 0.0
  %90 = vmatprep.subr.mxu0 0.0
  %91 = vmatpush2.msra.mxu0 0.0
  %92 = vmatprep.subr.mxu0 0.0
  %93 = vmatpush2.msra.mxu0 0.0
  %94 = vmatprep.subr.mxu0 0.0
  %95 = vmatpush2.msra.mxu0 0.0
  %96 = vmatprep.subr.mxu0 0.0
  %97 = vmatpush2.msra.mxu0 0.0
  %98 = vmatprep.subr.mxu0 0.0
  %99 = vmatpush2.msra.mxu0 0.0
  %100 = vmatprep.subr.mxu0 0.0
  %101 = vmatpush2.msra.mxu0 0.0
  %102 = vmatprep.mubr.f32.mxu0 0.0
  %103 = vmatmul.mubr.f32.gmra.mxu0 %v14
  %v104 = vpop.f32.mrf.mxu0
  %v105 = vadd.f32 %v36, %v104
  %v106 = vpop.f32.mrf.mxu0
  %107 = vdwg.mxu0
  %108 = vst [vmem:[%s3] sm:$0xff] %v105
  // Predicated region
  $region14: #{linear_forward.1} parent=0 // pred_check
    _
  $region15: #{linear_forward.1} parent=0 // pred_check_branch
    %110 = sbr.rel (0) target = $region17
  $region16: #{linear_forward.1} parent=0 // pred_region
    _
  $region17: #{linear_forward.1} parent=0 // pred_fallthru
    _
  // Predicated region
  $region18: #{linear_forward.1} parent=0 // pred_check
    _
  $region19: #{linear_forward.1} parent=0 // pred_check_branch
    %112 = sbr.rel (0) target = $region21
  $region20: #{linear_forward.1} parent=0 // pred_region
    _
  $region21: #{linear_forward.1} parent=0 // pred_fallthru
    _

</llo_original>
